<compile_context>
chip_gen: v7x
topology: tpu7x:2x2x1
jax: 0.10.0
libtpu: 0.0.40
codegen_flags: <defaults>
</compile_context>

<pallas_src>
import functools
import itertools
import math

import jax
import jax.numpy as jnp
from jax import lax
from jax.experimental import pallas as pl
from jax.experimental.pallas import tpu as pltpu

LAMB = 1.5                      # UCSNet default lamb (baked into the depth-head kernel)
BN_EPS = 1e-5
STAGE_CONFIGS = (64, 32, 8)     # depth hypotheses per stage (coarse -> fine)
DS_RATIO = {2: 4, 1: 2, 0: 1}   # stage_2 = 1/4 res, stage_1 = 1/2 res, stage_0 = full res


# ----------------------------------------------------------------------------
# lane-tile picker: largest multiple of 128 lanes under a VMEM budget, preferring
# exact divisors of P (no masked boundary block); P <= 128 -> full extent.
# ----------------------------------------------------------------------------
def _pick_lane_tile(P, per_lane_bytes, budget):
    if P <= 128:
        return P
    cap = max(128, min(P, (budget // max(per_lane_bytes, 1)) // 128 * 128))
    best = 0
    t = 128
    while t <= cap:
        if P % t == 0:
            best = t
        t += 128
    return best if best else cap


# ----------------------------------------------------------------------------
# Pallas kernel: fused conv matmul  (Cout, K) @ (K, tile_P)  + bias + ReLU -> bf16
# ----------------------------------------------------------------------------
def _conv_mm_kernel(w_ref, c_ref, b_ref, o_ref, *, relu):
    acc = jnp.dot(w_ref[...], c_ref[0], preferred_element_type=jnp.float32)
    acc = acc + b_ref[...]                      # bias / folded-BN shift (f32 epilogue)
    if relu:
        acc = jnp.maximum(acc, 0.0)
    o_ref[0] = acc.astype(o_ref.dtype)          # bf16 activations out


def _conv_matmul(w2d, col, bias_col, relu):
    """w2d: (Cout, K) bf16, col: (B, K, P) bf16, bias_col: (Cout, 1) f32 -> (B, Cout, P) bf16."""
    Cout0, K0 = w2d.shape
    B, _, P0 = col.shape
    # cheap alignment pads: weights are tiny; K-pad only hits the Cin=3 first layer;
    # P-pad only hits tiny / odd spatial extents.
    Cp = max(8, -(-Cout0 // 8) * 8)
    Kp = -(-K0 // 8) * 8
    Pp = max(128, -(-P0 // 128) * 128)
    if Cp != Cout0:
        w2d = jnp.pad(w2d, ((0, Cp - Cout0), (0, 0)))
        bias_col = jnp.pad(bias_col, ((0, Cp - Cout0), (0, 0)))
    if Kp != K0:
        w2d = jnp.pad(w2d, ((0, 0), (0, Kp - K0)))
        col = jnp.pad(col, ((0, 0), (0, Kp - K0), (0, 0)))
    if Pp != P0:
        col = jnp.pad(col, ((0, 0), (0, 0), (0, Pp - P0)))
    Cout, K, P = Cp, Kp, Pp

    # per-output-lane VMEM: double-buffered bf16 col (4K) + double-buffered bf16 out
    # (4*Cout) + f32 accumulator (4*Cout); 6 MiB budget leaves headroom under v5e's
    # 16 MiB scoped default (safe on v6e / v7x).
    per_lane = 4 * K + 4 * Cout + 4 * Cout
    tile_n = _pick_lane_tile(P, per_lane, budget=6 << 20)
    grid_n = P // tile_n

    out = pl.pallas_call(
        functools.partial(_conv_mm_kernel, relu=relu),
        out_shape=jax.ShapeDtypeStruct((B, Cout, P), jnp.bfloat16),
        grid=(grid_n, B),                                   # big axis first for v7x megacore
        in_specs=[pl.BlockSpec((Cout, K), lambda j, b: (0, 0)),
                  pl.BlockSpec((1, K, tile_n), lambda j, b: (b, 0, j)),
                  pl.BlockSpec((Cout, 1), lambda j, b: (0, 0))],
        out_specs=pl.BlockSpec((1, Cout, tile_n), lambda j, b: (b, 0, j)),
        compiler_params=pltpu.CompilerParams(
            dimension_semantics=("parallel", "parallel")),
    )(w2d, col, bias_col)
    return out[:, :Cout0, :P0]


# ----------------------------------------------------------------------------
# Convolutions (im2col glue in bf16 + fused Pallas MXU matmul)
# ----------------------------------------------------------------------------
@functools.partial(jax.jit, static_argnames=("stride", "padding", "relu"))
def conv_nd(x, w, bias=None, *, stride=1, padding=0, relu=False):
    """N-d convolution (PyTorch layout).  x: (B, Cin, *sp), w: (Cout, Cin, *k) (BN folded)."""
    nsp = x.ndim - 2
    ks = w.shape[2:]
    if isinstance(stride, int):
        stride = (stride,) * nsp
    if isinstance(padding, int):
        padding = tuple((padding, padding) for _ in range(nsp))
    xp = jnp.pad(x.astype(jnp.bfloat16), ((0, 0), (0, 0)) + tuple(padding))
    B, Cin = x.shape[:2]
    sp = xp.shape[2:]
    out_sp = tuple((sp[d] - ks[d]) // stride[d] + 1 for d in range(nsp))
    # TODO(synk): tap gathering still materializes a prod(ks)x col in HBM; move it into the
    # kernel (halo'd row blocks / manual DMA) to remove the dominant HBM blow-up.
    cols = []
    for offs in itertools.product(*[range(k) for k in ks]):
        idx = (slice(None), slice(None)) + tuple(
            slice(offs[d], offs[d] + stride[d] * out_sp[d], stride[d]) for d in range(nsp))
        cols.append(xp[idx])
    K = Cin * math.prod(ks)
    P = math.prod(out_sp)
    # (cin, tap)-major K to match w.reshape(Cout, K); no (B,P,K) transpose copy needed.
    col = jnp.stack(cols, axis=2).reshape(B, K, P)
    Cout = w.shape[0]
    w2d = w.reshape(Cout, K).astype(jnp.bfloat16)
    b_col = bias if bias is not None else jnp.zeros((Cout,), jnp.float32)
    b_col = b_col.astype(jnp.float32).reshape(Cout, 1)
    y = _conv_matmul(w2d, col, b_col, relu)                 # (B, Cout, P) bf16, on the MXU
    return y.reshape((B, Cout) + out_sp)


@functools.partial(jax.jit, static_argnames=("relu",))
def conv_transpose_nd(x, w, bias=None, *, relu=False):
    """PyTorch ConvTranspose (kernel 3, stride 2, pad 1, output_pad 1) via sub-pixel
    decomposition: one stride-1 conv on the *undilated* input with 2^ndim stacked 2-tap
    class kernels (skips the 7/8 zero taps of the naive zero-dilated formulation).
    w: (Cin, Cout, *k) (PyTorch ConvTranspose layout, BN already folded on Cout).
    # TODO(synk): validate the parity/flip decomposition numerically against a reference
    # conv_transpose (interpret mode); current checks are shape/finiteness only."""
    nsp = x.ndim - 2
    B = x.shape[0]
    Cout = w.shape[1]
    sp = x.shape[2:]
    # equivalent regular-conv weight: swap channel axes + flip taps
    w_conv = jnp.swapaxes(w, 0, 1)
    for d in range(nsp):
        w_conv = jnp.flip(w_conv, axis=2 + d)
    # append a zero tap per spatial axis so inactive taps gather 0
    for d in range(nsp):
        pad_cfg = [(0, 0)] * w_conv.ndim
        pad_cfg[2 + d] = (0, 1)
        w_conv = jnp.pad(w_conv, pad_cfg)
    idx_even = jnp.array([1, 3], jnp.int32)   # out[2j]   = x[j] * wflip[1]
    idx_odd = jnp.array([0, 2], jnp.int32)    # out[2j+1] = x[j]*wflip[0] + x[j+1]*wflip[2]
    class_ws = []
    for parity in itertools.product((0, 1), repeat=nsp):
        cw = w_conv
        for d, p in enumerate(parity):
            cw = jnp.take(cw, idx_odd if p else idx_even, axis=2 + d)
        class_ws.append(cw)                                   # (Cout, Cin, 2, ..., 2)
    w_all = jnp.concatenate(class_ws, axis=0)                 # (2^nsp * Cout, Cin, 2..2)
    b = bias if bias is not None else jnp.zeros((Cout,), jnp.float32)
    b_all = jnp.tile(b, 2 ** nsp)
    y = conv_nd(x, w_all, b_all, stride=1,
                padding=tuple((0, 1) for _ in range(nsp)), relu=relu)
    # interleave parity classes into the 2x-upsampled output
    y = y.reshape((B,) + (2,) * nsp + (Cout,) + sp)
    perm = [0, 1 + nsp]
    for d in range(nsp):
        perm += [2 + nsp + d, 1 + d]
    y = jnp.transpose(y, perm)
    return y.reshape((B, Cout) + tuple(2 * s for s in sp))


def _bn_scale(gamma):
    # eval-mode BatchNorm with running_mean = 0, running_var = 1 (deterministic init),
    # folded into the conv weights / bias.  Real checkpoints: fold actual running stats.
    return gamma / jnp.sqrt(1.0 + BN_EPS)


def conv_bn_relu(x, p, *, stride=1, padding=1, relu=True):
    s = _bn_scale(p["gamma"])
    w = p["w"] * s.reshape((-1,) + (1,) * (p["w"].ndim - 1))
    return conv_nd(x, w, p["beta"], stride=stride, padding=padding, relu=relu)


def deconv_bn_relu(x, p, *, relu=True):
    s = _bn_scale(p["gamma"])
    w = p["w"] * s.reshape((1, -1) + (1,) * (p["w"].ndim - 2))
    return conv_transpose_nd(x, p["w"] * 0 + w, p["beta"], relu=relu)


# ----------------------------------------------------------------------------
# Pallas kernel: streaming cost-volume variance over views (bf16 in / bf16 out,
# f32 accumulation), lane-flattened spatial tiling
# ----------------------------------------------------------------------------
def _variance_kernel(ref_ref, *rest):
    o_ref = rest[-1]
    warps = rest[:-1]
    inv_v = 1.0 / (len(warps) + 1)
    r = ref_ref[0].astype(jnp.float32)         # (1, tile_p); ref broadcasts over depth
    s = r
    sq = r * r
    for w_ref in warps:
        v = w_ref[0].astype(jnp.float32)       # (D, tile_p)
        s = s + v
        sq = sq + v * v
    mean = s * inv_v
    o_ref[0] = (sq * inv_v - mean * mean).astype(o_ref.dtype)   # E[x^2] - E[x]^2


@jax.jit
def cost_volume_variance(ref_feat, warped):
    """Per-element variance over [ref_feat broadcast over depth] + warped view volumes.
    ref_feat: (B, C, H, W) bf16; warped: list of (B, C, D, H, W) bf16.  >= 1 warped view."""
    B, C, H, W = ref_feat.shape
    D = warped[0].shape[2]
    P = H * W
    BC = B * C
    ref2 = ref_feat.reshape(BC, 1, P)
    warps = [w.reshape(BC, D, P) for w in warped]
    # per-lane VMEM: dbl-buffered bf16 warp blocks + dbl-buffered bf16 out + f32 running
    # sum / sq-sum / cast temporaries inside the kernel.
    per_lane = 4 * D * len(warps) + 4 * D + 12 * D + 16
    tile_p = _pick_lane_tile(P, per_lane, budget=8 << 20)
    n_p = pl.cdiv(P, tile_p)
    out = pl.pallas_call(
        _variance_kernel,
        out_shape=jax.ShapeDtypeStruct((BC, D, P), jnp.bfloat16),
        grid=(BC, n_p),
        in_specs=[pl.BlockSpec((1, 1, tile_p), lambda i, j: (i, 0, j))]
        + [pl.BlockSpec((1, D, tile_p), lambda i, j: (i, 0, j))] * len(warps),
        out_specs=pl.BlockSpec((1, D, tile_p), lambda i, j: (i, 0, j)),
        compiler_params=pltpu.CompilerParams(
            dimension_semantics=("parallel", "parallel")),
    )(ref2, *warps)
    return out.reshape(B, C, D, H, W)


# ----------------------------------------------------------------------------
# Pallas kernel: depth head (softmax / regression / confidence / variance),
# lane-flattened spatial tiling; depth samples may be a (B, D) vector (coarse stage)
# ----------------------------------------------------------------------------
def _depth_head_kernel(logits_ref, ds_ref, depth_ref, conf_ref, var_ref):
    logits = logits_ref[0].astype(jnp.float32)       # (D, T)
    ds = ds_ref[0].astype(jnp.float32)               # (D, T) or (D, 1) broadcast
    D = logits.shape[0]
    m = jnp.max(logits, axis=0, keepdims=True)
    e = jnp.exp(logits - m)
    p = e * pl.reciprocal(jnp.sum(e, axis=0, keepdims=True), approx=True)
    depth = jnp.sum(p * ds, axis=0, keepdims=True)   # (1, T) depth regression
    di = lax.broadcasted_iota(jnp.float32, p.shape, 0)
    didx = jnp.clip(jnp.floor(jnp.sum(p * di, axis=0, keepdims=True)), 0.0, D - 1.0)
    # photometric confidence: 4 * avg_pool3d(pad(p,(1,2)), 4) gathered at depth_index
    # == sum of p over the window [didx-1, didx+2] intersected with [0, D-1]
    win = (di >= didx - 1.0) & (di <= didx + 2.0)
    conf = jnp.sum(jnp.where(win, p, 0.0), axis=0, keepdims=True)
    var = LAMB * jnp.sqrt(jnp.sum((ds - depth) ** 2 * p, axis=0, keepdims=True))
    depth_ref[0] = depth
    conf_ref[0] = conf
    var_ref[0] = var


@jax.jit
def depth_head(prob_volume_pre, depth_samps):
    """prob_volume_pre: (B, D, H, W) bf16/f32; depth_samps: (B, D) or (B, D, H, W) f32."""
    B, D, H, W = prob_volume_pre.shape
    P = H * W
    logits = prob_volume_pre.reshape(B, D, P)
    ds_is_map = depth_samps.ndim == 4
    # per-lane VMEM: dbl-buffered bf16 logits + dbl-buffered f32 depth map (if any)
    # + ~6 live (D, T) f32 temporaries inside the kernel.
    per_lane = 4 * D + (8 * D if ds_is_map else 0) + 24 * D
    tile_p = _pick_lane_tile(P, per_lane, budget=5 << 20)
    n_p = pl.cdiv(P, tile_p)
    if ds_is_map:
        ds = depth_samps.reshape(B, D, P)
        ds_spec = pl.BlockSpec((1, D, tile_p), lambda j, b: (b, 0, j))
    else:
        ds = depth_samps.reshape(B, D, 1)
        ds_spec = pl.BlockSpec((1, D, 1), lambda j, b: (b, 0, 0))
    depth, conf, var = pl.pallas_call(
        _depth_head_kernel,
        out_shape=(jax.ShapeDtypeStruct((B, 1, P), jnp.float32),) * 3,
        grid=(n_p, B),
        in_specs=[pl.BlockSpec((1, D, tile_p), lambda j, b: (b, 0, j)), ds_spec],
        out_specs=[pl.BlockSpec((1, 1, tile_p), lambda j, b: (b, 0, j))] * 3,
        compiler_params=pltpu.CompilerParams(
            dimension_semantics=("parallel", "parallel")),
    )(logits, ds)
    return depth.reshape(B, H, W), conf.reshape(B, H, W), var.reshape(B, H, W)


# ----------------------------------------------------------------------------
# Parameter construction (deterministic, in-script)
# ----------------------------------------------------------------------------
def _winit(key, shape, scale=0.1):
    return jax.random.normal(key, shape, jnp.float32) * scale


def conv_bn_params(key, cin, cout, *ks):
    return {"w": _winit(key, (cout, cin) + ks),
            "gamma": jnp.ones((cout,), jnp.float32),
            "beta": jnp.zeros((cout,), jnp.float32)}


def deconv_bn_params(key, cin, cout, *ks):
    return {"w": _winit(key, (cin, cout) + ks),      # PyTorch ConvTranspose weight layout
            "gamma": jnp.ones((cout,), jnp.float32),
            "beta": jnp.zeros((cout,), jnp.float32)}


def init_featext(key, base=8):
    ks = iter(jax.random.split(key, 16))
    return {
        "conv0": [conv_bn_params(next(ks), 3, base, 3, 3),
                  conv_bn_params(next(ks), base, base, 3, 3)],
        "conv1": [conv_bn_params(next(ks), base, base * 2, 5, 5),
                  conv_bn_params(next(ks), base * 2, base * 2, 3, 3),
                  conv_bn_params(next(ks), base * 2, base * 2, 3, 3)],
        "conv2": [conv_bn_params(next(ks), base * 2, base * 4, 5, 5),
                  conv_bn_params(next(ks), base * 4, base * 4, 3, 3),
                  conv_bn_params(next(ks), base * 4, base * 4, 3, 3)],
        "out1": {"w": _winit(next(ks), (base * 4, base * 4, 1, 1))},
        "deconv1": {"deconv": deconv_bn_params(next(ks), base * 4, base * 2, 3, 3),
                    "conv": conv_bn_params(next(ks), base * 4, base * 2, 3, 3)},
        "out2": {"w": _winit(next(ks), (base * 2, base * 2, 1, 1))},
        "deconv2": {"deconv": deconv_bn_params(next(ks), base * 2, base, 3, 3),
                    "conv": conv_bn_params(next(ks), base * 2, base, 3, 3)},
        "out3": {"w": _winit(next(ks), (base, base, 1, 1))},
    }


def init_costreg(key, cin, base=8):
    ks = iter(jax.random.split(key, 11))
    return {
        "conv0": conv_bn_params(next(ks), cin, base, 3, 3, 3),
        "conv1": conv_bn_params(next(ks), base, base * 2, 3, 3, 3),
        "conv2": conv_bn_params(next(ks), base * 2, base * 2, 3, 3, 3),
        "conv3": conv_bn_params(next(ks), base * 2, base * 4, 3, 3, 3),
        "conv4": conv_bn_params(next(ks), base * 4, base * 4, 3, 3, 3),
        "conv5": conv_bn_params(next(ks), base * 4, base * 8, 3, 3, 3),
        "conv6": conv_bn_params(next(ks), base * 8, base * 8, 3, 3, 3),
        "conv7": deconv_bn_params(next(ks), base * 8, base * 4, 3, 3, 3),
        "conv9": deconv_bn_params(next(ks), base * 4, base * 2, 3, 3, 3),
        "conv11": deconv_bn_params(next(ks), base * 2, base, 3, 3, 3),
        "prob": {"w": _winit(next(ks), (1, base, 3, 3, 3)),
                 "b": jnp.zeros((1,), jnp.float32)},
    }


# ----------------------------------------------------------------------------
# Sub-networks
# ----------------------------------------------------------------------------
def featext_forward(p, x):
    def block(layers, x, first_stride, first_pad):
        x = conv_bn_relu(x, layers[0], stride=first_stride, padding=first_pad)
        for layer in layers[1:]:
            x = conv_bn_relu(x, layer, stride=1, padding=1)
        return x

    c0 = block(p["conv0"], x, 1, 1)
    c1 = block(p["conv1"], c0, 2, 2)
    c2 = block(p["conv2"], c1, 2, 2)
    outs = {}
    intra = c2
    outs["stage_2"] = conv_nd(intra, p["out1"]["w"])                 # 1/4 res, 4*base ch
    d = deconv_bn_relu(intra, p["deconv1"]["deconv"])
    intra = conv_bn_relu(jnp.concatenate([d, c1], axis=1), p["deconv1"]["conv"])
    outs["stage_1"] = conv_nd(intra, p["out2"]["w"])                 # 1/2 res, 2*base ch
    d = deconv_bn_relu(intra, p["deconv2"]["deconv"])
    intra = conv_bn_relu(jnp.concatenate([d, c0], axis=1), p["deconv2"]["conv"])
    outs["stage_0"] = conv_nd(intra, p["out3"]["w"])                 # full res, base ch
    return outs


def costreg_forward(p, x):
    c0 = conv_bn_relu(x, p["conv0"], stride=1, padding=1)
    c2 = conv_bn_relu(conv_bn_relu(c0, p["conv1"], stride=2, padding=1), p["conv2"])
    c4 = conv_bn_relu(conv_bn_relu(c2, p["conv3"], stride=2, padding=1), p["conv4"])
    x = conv_bn_relu(conv_bn_relu(c4, p["conv5"], stride=2, padding=1), p["conv6"])
    x = c4 + deconv_bn_relu(x, p["conv7"])
    x = c2 + deconv_bn_relu(x, p["conv9"])
    x = c0 + deconv_bn_relu(x, p["conv11"])
    return conv_nd(x, p["prob"]["w"], p["prob"]["b"], stride=1, padding=1)   # (B,1,D,H,W)


# ----------------------------------------------------------------------------
# Homography warping (gather stays in plain JAX) and resampling glue
# ----------------------------------------------------------------------------
@jax.jit
def grid_sample_bilinear_zeros(im, grid):
    """F.grid_sample(mode='bilinear', padding_mode='zeros', align_corners=False)."""
    B, C, H, W = im.shape
    gx, gy = grid[..., 0], grid[..., 1]
    ix = ((gx + 1.0) * W - 1.0) / 2.0
    iy = ((gy + 1.0) * H - 1.0) / 2.0
    x0, y0 = jnp.floor(ix), jnp.floor(iy)
    x1, y1 = x0 + 1.0, y0 + 1.0
    wx1, wy1 = ix - x0, iy - y0
    wx0, wy0 = 1.0 - wx1, 1.0 - wy1
    flat = im.reshape(B, C, H * W)

    def sample(xi, yi):
        valid = ((xi >= 0) & (xi <= W - 1) & (yi >= 0) & (yi <= H - 1)).astype(im.dtype)
        xc = jnp.clip(xi, 0, W - 1).astype(jnp.int32)
        yc = jnp.clip(yi, 0, H - 1).astype(jnp.int32)
        idx = (yc * W + xc).reshape(B, 1, -1)
        g = jnp.take_along_axis(flat, idx, axis=2).reshape(B, C, *xi.shape[1:])
        return g * valid[:, None]

    return (sample(x0, y0) * (wx0 * wy0)[:, None] + sample(x1, y0) * (wx1 * wy0)[:, None]
            + sample(x0, y1) * (wx0 * wy1)[:, None] + sample(x1, y1) * (wx1 * wy1)[:, None])


@jax.jit
def homo_warping(src_fea, src_proj, ref_proj, depth_values):
    # TODO(synk): the bilinear grid-sample gather has no clean Pallas TPU equivalent;
    # warping coordinate math + gather stay in plain JAX.  Output is bf16 so the
    # variance kernel reads half the bytes.
    B, C, H, W = src_fea.shape
    D = depth_values.shape[1]
    proj = src_proj @ jnp.linalg.inv(ref_proj)
    rot, trans = proj[:, :3, :3], proj[:, :3, 3:4]
    y, x = jnp.meshgrid(jnp.arange(H, dtype=jnp.float32),
                        jnp.arange(W, dtype=jnp.float32), indexing="ij")
    xyz = jnp.stack([x.ravel(), y.ravel(), jnp.ones(H * W, jnp.float32)], axis=0)   # (3, HW)
    rot_xyz = jnp.einsum("bij,jn->bin", rot, xyz)                                   # (B,3,HW)
    # depth_values may be (B, D) (coarse stage) or (B, D, H, W); broadcast in the multiply.
    rot_depth_xyz = rot_xyz[:, :, None, :] * depth_values.reshape(B, 1, D, -1)
    proj_xyz = rot_depth_xyz + trans.reshape(B, 3, 1, 1)
    proj_xy = proj_xyz[:, :2] / proj_xyz[:, 2:3]
    x_norm = proj_xy[:, 0] / ((W - 1) / 2.0) - 1.0
    y_norm = proj_xy[:, 1] / ((H - 1) / 2.0) - 1.0
    grid = jnp.stack([x_norm, y_norm], axis=-1).reshape(B, D * H, W, 2)
    warped = grid_sample_bilinear_zeros(src_fea, grid)
    return warped.reshape(B, C, D, H, W).astype(jnp.bfloat16)


@functools.partial(jax.jit, static_argnames=("out_h", "out_w"))
def interp_bilinear(x, *, out_h, out_w):
    """F.interpolate(mode='bilinear', align_corners=False) for NCHW tensors."""
    B, C, H, W = x.shape

    def src_index(out_size, in_size):
        scale = in_size / out_size
        s = jnp.maximum((jnp.arange(out_size, dtype=jnp.float32) + 0.5) * scale - 0.5, 0.0)
        i0 = jnp.minimum(jnp.floor(s).astype(jnp.int32), in_size - 1)
        i1 = jnp.minimum(i0 + 1, in_size - 1)
        return i0, i1, s - i0.astype(jnp.float32)

    y0, y1, wy = src_index(out_h, H)
    x0, x1, wx = src_index(out_w, W)
    top = (x[:, :, y0, :] * (1.0 - wy)[None, None, :, None]
           + x[:, :, y1, :] * wy[None, None, :, None])
    return top[:, :, :, x0] * (1.0 - wx) + top[:, :, :, x1] * wx


def uncertainty_aware_samples(cur_depth, exp_var, ndepth, shape):
    if cur_depth.ndim == 2:                                 # first stage: (B, D_init)
        dmin, dmax = cur_depth[:, 0], cur_depth[:, -1]
        interval = (dmax - dmin) / (ndepth - 1)
        # keep the (B, ndepth) vector; the depth-head / warping kernels broadcast it,
        # avoiding a materialized (B, ndepth, H, W) HBM volume at the largest-D stage.
        return (dmin[:, None]
                + jnp.arange(ndepth, dtype=cur_depth.dtype)[None, :] * interval[:, None])
    low = -jnp.minimum(cur_depth, exp_var)                  # (B,1,H,W)
    high = exp_var
    step = (high - low) / (float(ndepth) - 1)
    i = jnp.arange(ndepth, dtype=cur_depth.dtype).reshape(1, ndepth, 1, 1)
    return cur_depth + low + step * i + 1e-12


# ----------------------------------------------------------------------------
# compute_depth + UCSNet forward
# ----------------------------------------------------------------------------
def compute_depth(feats, proj_mats, depth_samps, costreg_p, lamb=LAMB):
    # TODO(synk): the optional guided-hints Gaussian modulation branch is omitted (hints=None).
    ref_feat, src_feats = feats[0], feats[1:]
    ref_proj = proj_mats[:, 0]
    warped = [homo_warping(src_fea, proj_mats[:, i + 1], ref_proj, depth_samps)
              for i, src_fea in enumerate(src_feats)]
    volume_variance = cost_volume_variance(ref_feat, warped)             # Pallas kernel
    prob_volume_pre = costreg_forward(costreg_p, volume_variance)[:, 0]  # (B, D, H, W)
    depth, prob_conf, exp_var = depth_head(prob_volume_pre, depth_samps)  # Pallas kernel
    return {"depth": depth, "photometric_confidence": prob_conf, "variance": exp_var}


def ucsnet_forward(params, imgs, proj_matrices, depth_values,
                   stage_configs=STAGE_CONFIGS, lamb=LAMB):
    B, V = imgs.shape[:2]
    H, W = imgs.shape[3], imgs.shape[4]
    features = [featext_forward(params["feat"], imgs[:, v]) for v in range(V)]

    outputs = {}
    depth, exp_var, out_stage = None, None, None
    for stage_idx in (2, 1, 0):
        name = f"stage_{stage_idx}"
        feats_stage = [f[name] for f in features]
        proj_stage = proj_matrices[name]
        scale = DS_RATIO[stage_idx]
        cur_h, cur_w = H // scale, W // scale
        if depth is not None:
            cur_depth = interp_bilinear(depth[:, None], out_h=cur_h, out_w=cur_w)
            exp_var_up = interp_bilinear(exp_var[:, None], out_h=cur_h, out_w=cur_w)
            samples = uncertainty_aware_samples(cur_depth, exp_var_up,
                                                stage_configs[2 - stage_idx],
                                                (B, cur_h, cur_w))
        else:
            samples = uncertainty_aware_samples(depth_values, None,
                                                stage_configs[2 - stage_idx],
                                                (B, cur_h, cur_w))
        out_stage = compute_depth(feats_stage, proj_stage, samples,
                                  params["costreg"][stage_idx], lamb)
        depth, exp_var = out_stage["depth"], out_stage["variance"]
        outputs[name] = depth[:, None]
    return {"depth": outputs, "loss_data": {"depth": outputs},
            "photometric_confidence": out_stage["photometric_confidence"]}


# ----------------------------------------------------------------------------
if __name__ == "__main__":
    key = jax.random.PRNGKey(0)
    B, V, H, W = 2, 3, 32, 32
    k_img, k_feat, k2, k1, k0 = jax.random.split(key, 5)

    imgs = jax.random.uniform(k_img, (B, V, 3, H, W), jnp.float32)
    params = {
        "feat": init_featext(k_feat, base=8),
        "costreg": {2: init_costreg(k2, cin=32, base=8),
                    1: init_costreg(k1, cin=16, base=8),
                    0: init_costreg(k0, cin=8, base=8)},
    }
    # proj matrices per stage: (B, V, 4, 4); identity ref, small x-translation for src views
    eye = jnp.broadcast_to(jnp.eye(4, dtype=jnp.float32), (B, V, 4, 4))
    shift = jnp.zeros((B, V, 4, 4), jnp.float32).at[:, 1:, 0, 3].set(
        0.4 * jnp.arange(1, V, dtype=jnp.float32))
    proj_matrices = {f"stage_{s}": eye + shift for s in (0, 1, 2)}
    depth_values = jnp.broadcast_to(
        jnp.linspace(1.0, 4.0, 8, dtype=jnp.float32)[None, :], (B, 8))

    out = ucsnet_forward(params, imgs, proj_matrices, depth_values)
    out = jax.block_until_ready(out)

    d0 = out["depth"]["stage_0"]
    assert d0.shape == (B, 1, H, W), d0.shape
    assert out["depth"]["stage_1"].shape == (B, 1, H // 2, W // 2)
    assert out["depth"]["stage_2"].shape == (B, 1, H // 4, W // 4)
    assert out["photometric_confidence"].shape == (B, H, W)
    assert bool(jnp.all(jnp.isfinite(d0)))
    assert bool(jnp.all(jnp.isfinite(out["photometric_confidence"])))
    print("KERNEL_OK")
</pallas_src>

<mosaic_0001>
module attributes {stable_mosaic.version = 11 : i64} {
  func.func @_conv_mm_kernel(%arg0: i32, %arg1: i32, %arg2: memref<8x32xbf16, #tpu.memory_space<vmem>>, %arg3: memref<1x32x1024xbf16, #tpu.memory_space<vmem>>, %arg4: memref<8x1xf32, #tpu.memory_space<vmem>>, %arg5: memref<1x8x1024xbf16, #tpu.memory_space<vmem>>) attributes {dimension_semantics = [#tpu.dimension_semantics<parallel>, #tpu.dimension_semantics<parallel>], iteration_bounds = array<i64: 1, 2>, scalar_prefetch = 0 : i64, scratch_operands = 0 : i64, tpu.core_type = #tpu.core_type<tc>, window_params = [{pipeline_mode = #tpu.pipeline_mode<synchronous>, transform_indices = @transform_0, window_bounds = array<i64: 8, 32>}, {transform_indices = @transform_1, window_bounds = array<i64: 1, 32, 1024>}, {pipeline_mode = #tpu.pipeline_mode<synchronous>, transform_indices = @transform_2, window_bounds = array<i64: 8, 1>}, {transform_indices = @transform_3, window_bounds = array<i64: 1, 8, 1024>}]} {
    %c0 = arith.constant 0 : index
    %c0_0 = arith.constant 0 : index
    %0 = vector.load %arg2[%c0, %c0_0] : memref<8x32xbf16, #tpu.memory_space<vmem>>, vector<8x32xbf16>
    %c0_1 = arith.constant 0 : index
    %c0_2 = arith.constant 0 : index
    %c0_3 = arith.constant 0 : index
    %1 = vector.load %arg3[%c0_1, %c0_2, %c0_3] : memref<1x32x1024xbf16, #tpu.memory_space<vmem>>, vector<1x32x1024xbf16>
    %2 = vector.shape_cast %1 : vector<1x32x1024xbf16> to vector<32x1024xbf16>
    %cst = arith.constant dense<0.000000e+00> : vector<8x1024xf32>
    %3 = tpu.matmul %0, %2, %cst {dimension_numbers = #tpu.dot_dimension_numbers<[1], [0], [0], [1], [0, 0, 1, 1], [], []>} : vector<8x32xbf16>, vector<32x1024xbf16>, vector<8x1024xf32> -> vector<8x1024xf32>
    %c0_4 = arith.constant 0 : index
    %c0_5 = arith.constant 0 : index
    %4 = vector.load %arg4[%c0_4, %c0_5] : memref<8x1xf32, #tpu.memory_space<vmem>>, vector<8x1xf32>
    %5 = vector.broadcast %4 : vector<8x1xf32> to vector<8x1024xf32>
    %6 = arith.addf %3, %5 : vector<8x1024xf32>
    %cst_6 = arith.constant 0.000000e+00 : f32
    %7 = vector.broadcast %cst_6 : f32 to vector<8x1024xf32>
    %8 = arith.maximumf %6, %7 : vector<8x1024xf32>
    %9 = arith.truncf %8 : vector<8x1024xf32> to vector<8x1024xbf16>
    %c0_7 = arith.constant 0 : index
    %c0_8 = arith.constant 0 : index
    %c0_9 = arith.constant 0 : index
    %10 = vector.load %arg5[%c0_7, %c0_8, %c0_9] : memref<1x8x1024xbf16, #tpu.memory_space<vmem>>, vector<1x8x1024xbf16>
    %11 = vector.shape_cast %10 : vector<1x8x1024xbf16> to vector<8x1024xbf16>
    %12 = vector.shape_cast %9 : vector<8x1024xbf16> to vector<1x8x1024xbf16>
    tpu.vector_store %arg5[%c0_7, %c0_8, %c0_9], %12 {strides = array<i32>} : memref<1x8x1024xbf16, #tpu.memory_space<vmem>>, vector<1x8x1024xbf16>,
    return
  }
  func.func @transform_0(%arg0: i32, %arg1: i32) -> (i32, i32) {
    %c0_i32 = arith.constant 0 : i32
    %c0_i32_0 = arith.constant 0 : i32
    %c0_i32_1 = arith.constant 0 : i32
    return %c0_i32, %c0_i32_0 : i32, i32
  }
  func.func @transform_1(%arg0: i32, %arg1: i32) -> (i32, i32, i32) {
    %c0_i32 = arith.constant 0 : i32
    %c0_i32_0 = arith.constant 0 : i32
    return %arg1, %c0_i32, %arg0 : i32, i32, i32
  }
  func.func @transform_2(%arg0: i32, %arg1: i32) -> (i32, i32) {
    %c0_i32 = arith.constant 0 : i32
    %c0_i32_0 = arith.constant 0 : i32
    %c0_i32_1 = arith.constant 0 : i32
    return %c0_i32, %c0_i32_0 : i32, i32
  }
  func.func @transform_3(%arg0: i32, %arg1: i32) -> (i32, i32, i32) {
    %c0_i32 = arith.constant 0 : i32
    %c0_i32_0 = arith.constant 0 : i32
    return %arg1, %c0_i32, %arg0 : i32, i32, i32
  }
}

</mosaic_0001>

<llo_original>
// kernel: conv_nd.1
$region0: #{conv_nd.1}
  #allocation0 [shape = 'u32[]', space=smem, size = 0x4, offset = 0x4, fixed_abs, tag = 'smem constant byte address 0x4 - core index']
  #allocation1 [shape = 'u32[144,128]{1,0:T(1,128)}', space=vmem, size = 0x12000, scoped, tag = 'internal scratch']
  %s0 = inlined_call_operand.vmem [shape: bf16[8,32], index: 0, kind: input, shape index: {}]
  %s1 = inlined_call_operand.vmem [shape: bf16[2,32,1024], index: 1, kind: input, shape index: {}]
  %s2 = inlined_call_operand.vmem [shape: f32[8,1], index: 2, kind: input, shape index: {}]
  %s3 = inlined_call_operand.vmem [shape: bf16[2,8,1024], index: 3, kind: output, shape index: {}]
  %s4 = sld [smem:[#allocation0]]
  $region45: #{conv_nd.1} parent=0
    _
  %s6 = ssub.s32 1, %s4
  %s7 = scalar_select 0, %s6, %s4
  loop: start=0, step=1, limit=4
  $region2: #{conv_nd.1} parent=0 // loop_pre_header
    _
  $region3: #{conv_nd.1} parent=0 // loop_header
    %s9 = sphi 0, %s13
    %p10 = scmp.ge.s32.totalorder %s9, 4
    %s16 = sphi 0, %s28
    %s17 = sphi 0, %s24
    %s18 = sphi 0, %s16
    %s19 = sphi 0, %s17
    %s20 = sphi 0, %s18
    %s21 = sphi 0, %s19
    %s29 = sphi 0, %s29
    %s31 = sphi 0, %s29
    %s32 = sphi 0, %s31
    %s46 = sphi 0, %s32
    %s54 = sphi 0, %s56
    %s57 = sphi 0, %s54
    %s58 = sphi 0, %s57
    %s74 = sphi 0, %s58
    %s78 = sphi 0, %s78
    %s80 = sphi 0, %s78
    %s81 = sphi 0, %s80
    %s95 = sphi 0, %s81
    %s103 = sphi 0, %s105
    %s106 = sphi 0, %s103
    %s107 = sphi 0, %s106
    %s123 = sphi 0, %s107
  $region4: #{conv_nd.1} parent=0 // loop_header_branch
    %12 = sbr.rel (%p10) target = $region8
  $region5: #{conv_nd.1} parent=0 // loop_body
    %s14 = ssub.s32 %s9, 1
    %s15 = ssub.s32 %s9, 2
    %s22 = sadd.s32 1, %s17
    %p23 = scmp.ge.s32.totalorder %s22, 2
    %s24 = scalar_select %p23, 0, %s22
    %s25 = sadd.s32 1, %s16
    %s26 = scalar_select %p23, %s25, %s16
    %p27 = scmp.ge.s32.totalorder %s26, 1
    %s28 = scalar_select %p27, 0, %s26
    %s30 = sadd.s32 %s29, 1
    %p33 = scmp.eq.s32.totalorder %s9, 1
    %p34 = scmp.ne.s32.totalorder %s29, %s31
    %p35 = scmp.eq.s32.totalorder %s9, 0
    %p36 = por %p34, %p35
    %p37 = scmp.ne.s32.totalorder %s29, %s31
    %p38 = scmp.eq.s32.totalorder %s14, 1
    %p39 = por %p37, %p38
    %p40 = scmp.ne.s32.totalorder %s31, %s32
    %p41 = scmp.eq.s32.totalorder %s14, 0
    %p42 = por %p40, %p41
    %p43 = scmp.ne.s32.totalorder %s31, %s32
    %p44 = scmp.eq.s32.totalorder %s15, 1
    %p45 = por %p43, %p44
    %p47 = scmp.ne.s32.totalorder %s32, %s46
    %p48 = scmp.eq.s32.totalorder %s15, 0
    %p49 = por %p47, %p48
    %s50 = ssub.s32 %s17, %s24
    %s51 = ssub.s32 %s16, %s28
    %s52 = sor.u32 %s50, %s51
    %p53 = scmp.eq.s32.totalorder %s52, 0
    %s55 = sadd.s32 %s54, 1
    %s56 = scalar_select %p53, %s54, %s55
    %p59 = pneg %p53
    %p60 = scmp.eq.s32.totalorder %s9, 1
    %p61 = por %p59, %p60
    %p62 = scmp.ne.s32.totalorder %s54, %s57
    %p63 = scmp.eq.s32.totalorder %s9, 0
    %p64 = por %p62, %p63
    %p65 = scmp.ne.s32.totalorder %s54, %s57
    %p66 = scmp.eq.s32.totalorder %s14, 1
    %p67 = por %p65, %p66
    %p68 = scmp.ne.s32.totalorder %s57, %s58
    %p69 = scmp.eq.s32.totalorder %s14, 0
    %p70 = por %p68, %p69
    %p71 = scmp.ne.s32.totalorder %s57, %s58
    %p72 = scmp.eq.s32.totalorder %s15, 1
    %p73 = por %p71, %p72
    %p75 = scmp.ne.s32.totalorder %s58, %s74
    %p76 = scmp.eq.s32.totalorder %s15, 0
    %p77 = por %p75, %p76
    %s79 = sadd.s32 %s78, 1
    %p82 = scmp.eq.s32.totalorder %s9, 1
    %p83 = scmp.ne.s32.totalorder %s78, %s80
    %p84 = scmp.eq.s32.totalorder %s9, 0
    %p85 = por %p83, %p84
    %p86 = scmp.ne.s32.totalorder %s78, %s80
    %p87 = scmp.eq.s32.totalorder %s14, 1
    %p88 = por %p86, %p87
    %p89 = scmp.ne.s32.totalorder %s80, %s81
    %p90 = scmp.eq.s32.totalorder %s14, 0
    %p91 = por %p89, %p90
    %p92 = scmp.ne.s32.totalorder %s80, %s81
    %p93 = scmp.eq.s32.totalorder %s15, 1
    %p94 = por %p92, %p93
    %p96 = scmp.ne.s32.totalorder %s81, %s95
    %p97 = scmp.eq.s32.totalorder %s15, 0
    %p98 = por %p96, %p97
    %s99 = ssub.s32 %s17, %s24
    %s100 = ssub.s32 %s16, %s28
    %s101 = sor.u32 %s99, %s100
    %p102 = scmp.eq.s32.totalorder %s101, 0
    %s104 = sadd.s32 %s103, 1
    %s105 = scalar_select %p102, %s103, %s104
    %p108 = pneg %p102
    %p109 = scmp.eq.s32.totalorder %s9, 1
    %p110 = por %p108, %p109
    %p111 = scmp.ne.s32.totalorder %s103, %s106
    %p112 = scmp.eq.s32.totalorder %s9, 0
    %p113 = por %p111, %p112
    %p114 = scmp.ne.s32.totalorder %s103, %s106
    %p115 = scmp.eq.s32.totalorder %s14, 1
    %p116 = por %p114, %p115
    %p117 = scmp.ne.s32.totalorder %s106, %s107
    %p118 = scmp.eq.s32.totalorder %s14, 0
    %p119 = por %p117, %p118
    %p120 = scmp.ne.s32.totalorder %s106, %s107
    %p121 = scmp.eq.s32.totalorder %s15, 1
    %p122 = por %p120, %p121
    %p124 = scmp.ne.s32.totalorder %s107, %s123
    %p125 = scmp.eq.s32.totalorder %s15, 0
    %p126 = por %p124, %p125
    %p127 = scmp.le.s32.totalorder 1, %s9
    %p128 = scmp.lt.s32.totalorder %s9, 3
    %p129 = pnand %p127, %p128
    %p130 = pneg %p129
    // Predicated region
    $region9: #{conv_nd.1} parent=5 // pred_check
      _
    $region10: #{conv_nd.1} parent=5 // pred_check_branch
      %132 = sbr.rel (%p129) target = $region12
    $region11: #{conv_nd.1} parent=5 // pred_region
      %s133 = ssub.s32 %s9, 1
      // Predicated region
      $region13: #{conv_nd.1} parent=11 // pred_check
        %p134 = pneg %p42
      $region14: #{conv_nd.1} parent=11 // pred_check_branch
        %136 = sbr.rel (%p134) target = $region16
      $region15: #{conv_nd.1} parent=11 // pred_region
        _
      $region16: #{conv_nd.1} parent=11 // pred_fallthru
        _
      // Predicated region
      $region17: #{conv_nd.1} parent=11 // pred_check
        %p137 = pneg %p91
      $region18: #{conv_nd.1} parent=11 // pred_check_branch
        %139 = sbr.rel (%p137) target = $region20
      $region19: #{conv_nd.1} parent=11 // pred_region
        _
      $region20: #{conv_nd.1} parent=11 // pred_fallthru
        _
    $region12: #{conv_nd.1} parent=5 // pred_fallthru
      _
    %p140 = scmp.lt.s32.totalorder %s9, 2
    // Predicated region
    $region21: #{conv_nd.1} parent=5 // pred_check
      %p141 = pneg %p140
    $region22: #{conv_nd.1} parent=5 // pred_check_branch
      %143 = sbr.rel (%p141) target = $region24
    $region23: #{conv_nd.1} parent=5 // pred_region
      // Predicated region
      $region25: #{conv_nd.1} parent=23 // pred_check
        %p144 = pneg %p64
      $region26: #{conv_nd.1} parent=23 // pred_check_branch
        %146 = sbr.rel (%p144) target = $region28
      $region27: #{conv_nd.1} parent=23 // pred_region
        %s147 = smul.u32 8, %s16
        %p148 = scmp.lt.s32.totalorder %s17, 1
        %s149 = scalar_select %p148, %s17, 1
        %p150 = scmp.lt.s32.totalorder %s147, 7
        %s151 = scalar_select %p150, %s147, 7
        %s152 = smul.addr %s149, 32
        %s153 = sadd.s32 %s151, %s152
        %s154 = smul.addr %s153, 4
        %s155 = scalar_lea.vmem %s1, %s154
        %s156 = smul.u32 8, %s16
      $region28: #{conv_nd.1} parent=23 // pred_fallthru
        _
    $region24: #{conv_nd.1} parent=5 // pred_fallthru
      _
    %p157 = scmp.le.s32.totalorder 1, %s9
    %p158 = scmp.lt.s32.totalorder %s9, 3
    %p159 = pnand %p157, %p158
    %p160 = pneg %p159
    // Predicated region
    $region29: #{conv_nd.1} parent=5 // pred_check
      _
    $region30: #{conv_nd.1} parent=5 // pred_check_branch
      %162 = sbr.rel (%p159) target = $region32
    $region31: #{conv_nd.1} parent=5 // pred_region
      %s163 = ssub.s32 %s9, 1
      %p164 = pneg %p42
      %p165 = pneg %p39
      %s166 = smul.u32 8, %s18
      %p167 = scmp.lt.s32.totalorder %s19, 1
      %s168 = scalar_select %p167, %s19, 1
      %p169 = scmp.lt.s32.totalorder %s166, 7
      %s170 = scalar_select %p169, %s166, 7
      %s171 = smul.addr %s168, 32
      %s172 = sadd.s32 %s170, %s171
      %s173 = smul.addr %s172, 4
      %s174 = scalar_lea.vmem %s1, %s173
      %p175 = pneg %p70
      %p176 = pneg %p67
      %p177 = pneg %p91
      %p178 = pneg %p88
      %p179 = pneg %p119
      %p180 = pneg %p116
      %s181 = smul.u32 8, %s18
      %p182 = scmp.lt.s32.totalorder %s19, 1
      %s183 = scalar_select %p182, %s19, 1
      %p184 = scmp.lt.s32.totalorder %s181, 7
      %s185 = scalar_select %p184, %s181, 7
      %s186 = smul.addr %s183, 8
      %s187 = sadd.s32 %s185, %s186
      %s188 = smul.addr %s187, 4
      %s189 = scalar_lea.vmem %s3, %s188
      %s190 = smul.u32 8, %s18
      %p191 = scmp.lt.s32.totalorder %s19, 1
      %s192 = scalar_select %p191, %s19, 1
      %p193 = scmp.lt.s32.totalorder %s190, 7
      %s194 = scalar_select %p193, %s190, 7
      %s195 = smul.addr %s192, 32
      %s196 = sadd.s32 %s194, %s195
      %s197 = smul.addr %s196, 4
      %s198 = scalar_lea.vmem %s1, %s197
      %s199 = smul.u32 8, %s18
      %s200 = smul.u32 8, %s18
      %p201 = scmp.lt.s32.totalorder %s19, 1
      %s202 = scalar_select %p201, %s19, 1
      %p203 = scmp.lt.s32.totalorder %s200, 7
      %s204 = scalar_select %p203, %s200, 7
      %s205 = smul.addr %s202, 8
      %s206 = sadd.s32 %s204, %s205
      %s207 = smul.addr %s206, 4
      %s208 = scalar_lea.vmem %s3, %s207
      %s209 = smul.u32 8, %s18
      %v211 = vld [vmem:[%s0] sm:$0xf]
      %v212 = vld [vmem:[%s198] sm:$0xff]
      %v213 = vld [vmem:[%s198 + $0x8] sm:$0xff]
      %v214 = vld [vmem:[%s198 + $0x10] sm:$0xff]
      %v215 = vld [vmem:[%s198 + $0x18] sm:$0xff]
      %v216 = vld [vmem:[%s198 + $0x20] sm:$0xff]
      %v217 = vld [vmem:[%s198 + $0x28] sm:$0xff]
      %v218 = vld [vmem:[%s198 + $0x30] sm:$0xff]
      %v219 = vld [vmem:[%s198 + $0x38] sm:$0xff]
      %v220 = vld [vmem:[%s198 + $0x40] sm:$0xff]
      %v221 = vld [vmem:[%s198 + $0x48] sm:$0xff]
      %v222 = vld [vmem:[%s198 + $0x50] sm:$0xff]
      %v223 = vld [vmem:[%s198 + $0x58] sm:$0xff]
      %v224 = vld [vmem:[%s198 + $0x60] sm:$0xff]
      %v225 = vld [vmem:[%s198 + $0x68] sm:$0xff]
      %v226 = vld [vmem:[%s198 + $0x70] sm:$0xff]
      %v227 = vld [vmem:[%s198 + $0x78] sm:$0xff]
      %v228 = vld [vmem:[%s2] sm:$0xff]
      %230 = vset.pattern.permute.xlu0 0
      %231 = vperm.xlu0 %230, %v228
      %v232 = vpop.permute.xlu0 %231
      %v250 = vunpack.c.l.b16 %v212
      %v251 = vunpack.c.h.b16 %v212
      %v252 = vunpack.c.l.b16 %v213
      %v253 = vunpack.c.h.b16 %v213
      %v254 = vunpack.c.l.b16 %v214
      %v255 = vunpack.c.h.b16 %v214
      %v256 = vunpack.c.l.b16 %v215
      %v257 = vunpack.c.h.b16 %v215
      %v258 = vunpack.c.l.b16 %v216
      %v259 = vunpack.c.h.b16 %v216
      %v260 = vunpack.c.l.b16 %v217
      %v261 = vunpack.c.h.b16 %v217
      %v262 = vunpack.c.l.b16 %v218
      %v263 = vunpack.c.h.b16 %v218
      %v264 = vunpack.c.l.b16 %v219
      %v265 = vunpack.c.h.b16 %v219
      %v266 = vunpack.c.l.b16 %v220
      %v267 = vunpack.c.h.b16 %v220
      %v268 = vunpack.c.l.b16 %v221
      %v269 = vunpack.c.h.b16 %v221
      %v270 = vunpack.c.l.b16 %v222
      %v271 = vunpack.c.h.b16 %v222
      %v272 = vunpack.c.l.b16 %v223
      %v273 = vunpack.c.h.b16 %v223
      %v274 = vunpack.c.l.b16 %v224
      %v275 = vunpack.c.h.b16 %v224
      %v276 = vunpack.c.l.b16 %v225
      %v277 = vunpack.c.h.b16 %v225
      %v278 = vunpack.c.l.b16 %v226
      %v279 = vunpack.c.h.b16 %v226
      %v280 = vunpack.c.l.b16 %v227
      %v281 = vunpack.c.h.b16 %v227
      %v282 = vpack.c.b16 %v258, %v250
      %v283 = vpack.c.b16 %v259, %v251
      %v284 = vpack.c.b16 %v260, %v252
      %v285 = vpack.c.b16 %v261, %v253
      %v286 = vpack.c.b16 %v262, %v254
      %v287 = vpack.c.b16 %v263, %v255
      %v288 = vpack.c.b16 %v264, %v256
      %v289 = vpack.c.b16 %v265, %v257
      %v290 = vpack.c.b16 %v274, %v266
      %v291 = vpack.c.b16 %v275, %v267
      %v292 = vpack.c.b16 %v276, %v268
      %v293 = vpack.c.b16 %v277, %v269
      %v294 = vpack.c.b16 %v278, %v270
      %v295 = vpack.c.b16 %v279, %v271
      %v296 = vpack.c.b16 %v280, %v272
      %v297 = vpack.c.b16 %v281, %v273
      %vm314 = vcmask 261120
      %v316 = vsel %vm314, %v211, 0
      %318 = vmatprep.subr.bf16.mxu0 %v283
      %319 = vmatpush1.bf16.msra.mxu0 %v282
      %320 = vmatprep.subr.bf16.mxu0 %v291
      %321 = vmatpush1.bf16.msra.mxu0 %v290
      %322 = vmatprep.subr.bf16.mxu0 0
      %323 = vmatpush1.bf16.msra.mxu0 0
      %324 = vmatprep.subr.bf16.mxu0 0
      %325 = vmatpush1.bf16.msra.mxu0 0
      %326 = vmatprep.subr.bf16.mxu0 0
      %327 = vmatpush1.bf16.msra.mxu0 0
      %328 = vmatprep.subr.bf16.mxu0 0
      %329 = vmatpush1.bf16.msra.mxu0 0
      %330 = vmatprep.subr.bf16.mxu0 0
      %331 = vmatpush1.bf16.msra.mxu0 0
      %332 = vmatprep.subr.bf16.mxu0 0
      %333 = vmatpush1.bf16.msra.mxu0 0
      %334 = vmatprep.subr.bf16.mxu0 0
      %335 = vmatpush1.bf16.msra.mxu0 0
      %336 = vmatprep.subr.bf16.mxu0 0
      %337 = vmatpush1.bf16.msra.mxu0 0
      %338 = vmatprep.subr.bf16.mxu0 0
      %339 = vmatpush1.bf16.msra.mxu0 0
      %340 = vmatprep.subr.bf16.mxu0 0
      %341 = vmatpush1.bf16.msra.mxu0 0
      %342 = vmatprep.subr.bf16.mxu0 0
      %343 = vmatpush1.bf16.msra.mxu0 0
      %344 = vmatprep.subr.bf16.mxu0 0
      %345 = vmatpush1.bf16.msra.mxu0 0
      %346 = vmatprep.subr.bf16.mxu0 0
      %347 = vmatpush1.bf16.msra.mxu0 0
      %348 = vmatprep.subr.bf16.mxu0 0
      %349 = vmatpush1.bf16.msra.mxu0 0
      %350 = vmatprep.mubr.bf16.mxu0 0
      %351 = vmatmul.mubr.bf16.gmra.mrb[0].mxu0 %v316
      %v352 = vpop.f32.mrb[0].mxu0
      %v353 = vadd.f32 %v232, %v352
      %v354 = vpop.f32.mrb[0].mxu0
      %v355 = vadd.f32 %v232, %v354
      %v356 = vpop.f32.mrb[0].mxu0
      %v357 = vpop.f32.mrb[0].mxu0
      %358 = vdwg.mxu0
      %359 = vmatprep.subr.bf16.mxu0 %v285
      %360 = vmatpush1.bf16.msra.mxu0 %v284
      %361 = vmatprep.subr.bf16.mxu0 %v293
      %362 = vmatpush1.bf16.msra.mxu0 %v292
      %363 = vmatprep.subr.bf16.mxu0 0
      %364 = vmatpush1.bf16.msra.mxu0 0
      %365 = vmatprep.subr.bf16.mxu0 0
      %366 = vmatpush1.bf16.msra.mxu0 0
      %367 = vmatprep.subr.bf16.mxu0 0
      %368 = vmatpush1.bf16.msra.mxu0 0
      %369 = vmatprep.subr.bf16.mxu0 0
      %370 = vmatpush1.bf16.msra.mxu0 0
      %371 = vmatprep.subr.bf16.mxu0 0
      %372 = vmatpush1.bf16.msra.mxu0 0
      %373 = vmatprep.subr.bf16.mxu0 0
      %374 = vmatpush1.bf16.msra.mxu0 0
      %375 = vmatprep.subr.bf16.mxu0 0
      %376 = vmatpush1.bf16.msra.mxu0 0
      %377 = vmatprep.subr.bf16.mxu0 0
      %378 = vmatpush1.bf16.msra.mxu0 0
      %379 = vmatprep.subr.bf16.mxu0 0
      %380 = vmatpush1.bf16.msra.mxu0 0
      %381 = vmatprep.subr.bf16.mxu0 0
      %382 = vmatpush1.bf16.msra.mxu0 0
      %383 = vmatprep.subr.bf16.mxu0 0
      %384 = vmatpush1.bf16.msra.mxu0 0
      %385 = vmatprep.subr.bf16.mxu0 0
      %386 = vmatpush1.bf16.msra.mxu0 0
      %387 = vmatprep.subr.bf16.mxu0 0
      %388 = vmatpush1.bf16.msra.mxu0 0
      %389 = vmatprep.subr.bf16.mxu0 0
      %390 = vmatpush1.bf16.msra.mxu0 0
      %391 = vmatprep.mubr.bf16.mxu0 0
      %392 = vmatmul.mubr.bf16.gmra.mrb[0].mxu0 %v316
      %v393 = vpop.f32.mrb[0].mxu0
      %v394 = vadd.f32 %v232, %v393
      %v395 = vpop.f32.mrb[0].mxu0
      %v396 = vadd.f32 %v232, %v395
      %v397 = vpop.f32.mrb[0].mxu0
      %v398 = vpop.f32.mrb[0].mxu0
      %399 = vdwg.mxu0
      %400 = vmatprep.subr.bf16.mxu0 %v287
      %401 = vmatpush1.bf16.msra.mxu0 %v286
      %402 = vmatprep.subr.bf16.mxu0 %v295
      %403 = vmatpush1.bf16.msra.mxu0 %v294
      %404 = vmatprep.subr.bf16.mxu0 0
      %405 = vmatpush1.bf16.msra.mxu0 0
      %406 = vmatprep.subr.bf16.mxu0 0
      %407 = vmatpush1.bf16.msra.mxu0 0
      %408 = vmatprep.subr.bf16.mxu0 0
      %409 = vmatpush1.bf16.msra.mxu0 0
      %410 = vmatprep.subr.bf16.mxu0 0
      %411 = vmatpush1.bf16.msra.mxu0 0
      %412 = vmatprep.subr.bf16.mxu0 0
      %413 = vmatpush1.bf16.msra.mxu0 0
      %414 = vmatprep.subr.bf16.mxu0 0
      %415 = vmatpush1.bf16.msra.mxu0 0
      %416 = vmatprep.subr.bf16.mxu0 0
      %417 = vmatpush1.bf16.msra.mxu0 0
      %418 = vmatprep.subr.bf16.mxu0 0
      %419 = vmatpush1.bf16.msra.mxu0 0
      %420 = vmatprep.subr.bf16.mxu0 0
      %421 = vmatpush1.bf16.msra.mxu0 0
      %422 = vmatprep.subr.bf16.mxu0 0
      %423 = vmatpush1.bf16.msra.mxu0 0
      %424 = vmatprep.subr.bf16.mxu0 0
      %425 = vmatpush1.bf16.msra.mxu0 0
      %426 = vmatprep.subr.bf16.mxu0 0
      %427 = vmatpush1.bf16.msra.mxu0 0
      %428 = vmatprep.subr.bf16.mxu0 0
      %429 = vmatpush1.bf16.msra.mxu0 0
      %430 = vmatprep.subr.bf16.mxu0 0
      %431 = vmatpush1.bf16.msra.mxu0 0
      %432 = vmatprep.mubr.bf16.mxu0 0
      %433 = vmatmul.mubr.bf16.gmra.mrb[0].mxu0 %v316
      %v434 = vpop.f32.mrb[0].mxu0
      %v435 = vadd.f32 %v232, %v434
      %v436 = vpop.f32.mrb[0].mxu0
      %v437 = vadd.f32 %v232, %v436
      %v438 = vpop.f32.mrb[0].mxu0
      %v439 = vpop.f32.mrb[0].mxu0
      %440 = vdwg.mxu0
      %441 = vmatprep.subr.bf16.mxu0 %v289
      %442 = vmatpush1.bf16.msra.mxu0 %v288
      %443 = vmatprep.subr.bf16.mxu0 %v297
      %444 = vmatpush1.bf16.msra.mxu0 %v296
      %445 = vmatprep.subr.bf16.mxu0 0
      %446 = vmatpush1.bf16.msra.mxu0 0
      %447 = vmatprep.subr.bf16.mxu0 0
      %448 = vmatpush1.bf16.msra.mxu0 0
      %449 = vmatprep.subr.bf16.mxu0 0
      %450 = vmatpush1.bf16.msra.mxu0 0
      %451 = vmatprep.subr.bf16.mxu0 0
      %452 = vmatpush1.bf16.msra.mxu0 0
      %453 = vmatprep.subr.bf16.mxu0 0
      %454 = vmatpush1.bf16.msra.mxu0 0
      %455 = vmatprep.subr.bf16.mxu0 0
      %456 = vmatpush1.bf16.msra.mxu0 0
      %457 = vmatprep.subr.bf16.mxu0 0
      %458 = vmatpush1.bf16.msra.mxu0 0
      %459 = vmatprep.subr.bf16.mxu0 0
      %460 = vmatpush1.bf16.msra.mxu0 0
      %461 = vmatprep.subr.bf16.mxu0 0
      %462 = vmatpush1.bf16.msra.mxu0 0
      %463 = vmatprep.subr.bf16.mxu0 0
      %464 = vmatpush1.bf16.msra.mxu0 0
      %465 = vmatprep.subr.bf16.mxu0 0
      %466 = vmatpush1.bf16.msra.mxu0 0
      %467 = vmatprep.subr.bf16.mxu0 0
      %468 = vmatpush1.bf16.msra.mxu0 0
      %469 = vmatprep.subr.bf16.mxu0 0
      %470 = vmatpush1.bf16.msra.mxu0 0
      %471 = vmatprep.subr.bf16.mxu0 0
      %472 = vmatpush1.bf16.msra.mxu0 0
      %473 = vmatprep.mubr.bf16.mxu0 0
      %474 = vmatmul.mubr.bf16.gmra.mrb[0].mxu0 %v316
      %v475 = vpop.f32.mrb[0].mxu0
      %v476 = vadd.f32 %v232, %v475
      %v477 = vpop.f32.mrb[0].mxu0
      %v478 = vadd.f32 %v232, %v477
      %v479 = vpop.f32.mrb[0].mxu0
      %v480 = vpop.f32.mrb[0].mxu0
      %481 = vdwg.mxu0
      %v482 = vmax.f32 %v353, 0.0
      %v483 = vmax.f32 %v355, 0.0
      %v484 = vmax.f32 %v394, 0.0
      %v485 = vmax.f32 %v396, 0.0
      %v486 = vmax.f32 %v435, 0.0
      %v487 = vmax.f32 %v437, 0.0
      %v488 = vmax.f32 %v476, 0.0
      %v489 = vmax.f32 %v478, 0.0
      %v490 = vpack.c.bf16 %v482, %v482
      %v491 = vpack.c.bf16 %v483, %v483
      %v492 = vpack.c.bf16 %v484, %v484
      %v493 = vpack.c.bf16 %v485, %v485
      %v494 = vpack.c.bf16 %v486, %v486
      %v495 = vpack.c.bf16 %v487, %v487
      %v496 = vpack.c.bf16 %v488, %v488
      %v497 = vpack.c.bf16 %v489, %v489
      %v506 = vunpack.c.l.b16 %v490
      %v507 = vunpack.c.l.b16 %v491
      %v508 = vunpack.c.l.b16 %v492
      %v509 = vunpack.c.l.b16 %v493
      %v510 = vunpack.c.l.b16 %v494
      %v511 = vunpack.c.l.b16 %v495
      %v512 = vunpack.c.l.b16 %v496
      %v513 = vunpack.c.l.b16 %v497
      %v514 = vpack.c.b16 %v507, %v506
      %v515 = vpack.c.b16 %v509, %v508
      %v516 = vpack.c.b16 %v511, %v510
      %v517 = vpack.c.b16 %v513, %v512
      %522 = vst [vmem:[%s208] sm:$0xff] %v514
      %523 = vst [vmem:[%s208 + $0x8] sm:$0xff] %v515
      %524 = vst [vmem:[%s208 + $0x10] sm:$0xff] %v516
      %525 = vst [vmem:[%s208 + $0x18] sm:$0xff] %v517
      %s526 = smul.u32 8, %s18
      %p527 = scmp.lt.s32.totalorder %s19, 1
      %s528 = scalar_select %p527, %s19, 1
      %p529 = scmp.lt.s32.totalorder %s526, 7
      %s530 = scalar_select %p529, %s526, 7
      %s531 = smul.addr %s528, 8
      %s532 = sadd.s32 %s530, %s531
      %s533 = smul.addr %s532, 4
      %s534 = scalar_lea.vmem %s3, %s533
      // Predicated region
      $region33: #{conv_nd.1} parent=31 // pred_check
        %p535 = pneg %p116
      $region34: #{conv_nd.1} parent=31 // pred_check_branch
        %537 = sbr.rel (%p535) target = $region36
      $region35: #{conv_nd.1} parent=31 // pred_region
        %s538 = smul.u32 8, %s18
      $region36: #{conv_nd.1} parent=31 // pred_fallthru
        _
    $region32: #{conv_nd.1} parent=5 // pred_fallthru
      _
    %p539 = scmp.le.s32.totalorder 2, %s9
    // Predicated region
    $region37: #{conv_nd.1} parent=5 // pred_check
      %p540 = pneg %p539
    $region38: #{conv_nd.1} parent=5 // pred_check_branch
      %542 = sbr.rel (%p540) target = $region40
    $region39: #{conv_nd.1} parent=5 // pred_region
      %s543 = ssub.s32 %s9, 2
      // Predicated region
      $region41: #{conv_nd.1} parent=39 // pred_check
        %p544 = pneg %p122
      $region42: #{conv_nd.1} parent=39 // pred_check_branch
        %546 = sbr.rel (%p544) target = $region44
      $region43: #{conv_nd.1} parent=39 // pred_region
        %s547 = smul.u32 8, %s20
        %p548 = scmp.lt.s32.totalorder %s21, 1
        %s549 = scalar_select %p548, %s21, 1
        %p550 = scmp.lt.s32.totalorder %s547, 7
        %s551 = scalar_select %p550, %s547, 7
        %s552 = smul.addr %s549, 8
        %s553 = sadd.s32 %s551, %s552
        %s554 = smul.addr %s553, 4
        %s555 = scalar_lea.vmem %s3, %s554
      $region44: #{conv_nd.1} parent=39 // pred_fallthru
        _
    $region40: #{conv_nd.1} parent=5 // pred_fallthru
      _
  $region6: #{conv_nd.1} parent=0 // loop_footer
    %s13 = sadd.s32 1, %s9
  $region7: #{conv_nd.1} parent=0 // loop_footer_branch
    %8 = sbr.rel target = $region3
  $region8: #{conv_nd.1} parent=0 // loop_exit
    _

</llo_original>
